<compile_context>
chip_gen: v6e
topology: v6e:2x2x1
jax: 0.10.0
libtpu: 0.0.40
codegen_flags: <defaults>
</compile_context>

<pallas_src>
import functools

import jax
import jax.numpy as jnp
from jax.experimental import pallas as pl
from jax.experimental.pallas import tpu as pltpu

LANE = 128
MIN_THW = 4 * LANE          # 512-lane floor on the spatial tile


def _channel_attention_kernel(x_ref, w1t_ref, w2t_ref, o_ref,
                              sum_ref, max_ref, *,
                              hw, thw, tb, c, use_mxu_sum):
    # x_ref:   (TB, C, THW)        input tile (f32 or bf16)
    # w1t_ref: (C, Cr)             conv1 weight, transposed (resident)
    # w2t_ref: (Cr, C)             conv2 weight, transposed (resident)
    # o_ref:   (TB, 1, C)          sigmoid(mlp(avg) + mlp(max))
    # sum_ref/max_ref: f32 running accumulators in VMEM scratch
    #   use_mxu_sum: shape (TB*C, 1)   else: shape (TB, C)
    k = pl.program_id(1)
    nk = pl.num_programs(1)

    @pl.when(k == 0)
    def _init():
        sum_ref[...] = jnp.zeros_like(sum_ref)
        max_ref[...] = jnp.full(max_ref.shape, -jnp.inf, max_ref.dtype)

    x = x_ref[...]                                        # native dtype, no cast

    def accumulate(xs, xm):
        if use_mxu_sum:
            # Sum over lanes on the MXU (idle otherwise): bf16/f32 in, f32 accum.
            ones = jnp.ones((thw, 1), dtype=xs.dtype)
            sum_ref[...] += jnp.dot(xs.reshape(tb * c, thw), ones,
                                    preferred_element_type=jnp.float32)
            # Max on the VPU in the native dtype; per-vreg-row reduce, column layout.
            mcol = jnp.max(xm.reshape(tb * c, thw), axis=-1, keepdims=True)
            max_ref[...] = jnp.maximum(max_ref[...], mcol.astype(jnp.float32))
        else:
            sum_ref[...] += jnp.sum(xs.astype(jnp.float32), axis=-1)
            max_ref[...] = jnp.maximum(
                max_ref[...], jnp.max(xm, axis=-1).astype(jnp.float32))

    if hw % thw == 0:
        # Fast path: every tile is full — no masking anywhere.
        accumulate(x, x)
    else:
        # Masking only on the final (ragged) spatial step.
        rem = hw - ((hw + thw - 1) // thw - 1) * thw      # valid lanes in last tile

        @pl.when(k < nk - 1)
        def _full():
            accumulate(x, x)

        @pl.when(k == nk - 1)
        def _ragged():
            idx = jax.lax.broadcasted_iota(jnp.int32, x.shape, dimension=2)
            valid = idx < rem
            accumulate(jnp.where(valid, x, jnp.zeros_like(x)),
                       jnp.where(valid, x, jnp.full_like(x, -jnp.inf)))

    @pl.when(k == nk - 1)
    def _finalize():
        s = sum_ref[...]
        m = max_ref[...]
        if use_mxu_sum:
            s = s.reshape(tb, c)                          # single relayout, finalize only
            m = m.reshape(tb, c)
        avg = s * (1.0 / hw)                              # (TB, C)
        pooled = jnp.concatenate([avg, m], axis=0)        # (2*TB, C)
        h = jnp.dot(pooled, w1t_ref[...], preferred_element_type=jnp.float32)
        h = jnp.maximum(h, 0.0)                           # ReLU
        out = jnp.dot(h, w2t_ref[...], preferred_element_type=jnp.float32)
        out = out[:tb] + out[tb:]                         # avg-branch + max-branch
        o_ref[...] = jax.nn.sigmoid(out).astype(o_ref.dtype).reshape(tb, 1, c)


def _largest_divisor_leq(n, cap):
    cap = max(1, min(n, cap))
    for d in range(cap, 0, -1):
        if n % d == 0:
            return d
    return 1


def channel_attention(x, w1, w2, *, tile_target_bytes=8 * 1024 * 1024):
    """x: (B, C, H, W); w1: (Cr, C, 1, 1); w2: (C, Cr, 1, 1). Returns (B, C, 1, 1)."""
    B, C, H, W = x.shape
    Cr = w1.shape[0]
    HW = H * W

    x_flat = x.reshape(B, C, HW)
    w1t = w1.reshape(Cr, C).T.astype(jnp.float32)   # (C, Cr)
    w2t = w2.reshape(C, Cr).T.astype(jnp.float32)   # (Cr, C)

    itemsize = jnp.dtype(x.dtype).itemsize

    # --- batch tile: divisor of B, bounded by 8 and by the VMEM budget at the
    # 512-lane THW floor; force >= 2 parallel blocks when B >= 2 (v7x megacore).
    max_tb_budget = max(1, tile_target_bytes // max(1, C * MIN_THW * itemsize))
    tb_cap = min(8, max_tb_budget)
    if B >= 2:
        tb_cap = min(tb_cap, max(1, B // 2))
    TB = _largest_divisor_leq(B, tb_cap)
    n_b = B // TB

    # --- spatial tile: multiple of 128 lanes, never below the 512-lane floor,
    # sized from the tile budget; clamp to the full extent when it fits.
    chunk_bytes = max(1, TB * C * LANE * itemsize)
    THW = max(MIN_THW, (tile_target_bytes // chunk_bytes) * LANE)
    if THW >= HW:
        THW = HW
    n_hw = pl.cdiv(HW, THW)

    # MXU-sum path needs the (TB, C, THW) -> (TB*C, THW) merge to be a free view.
    packing = max(1, 4 // itemsize)                 # sublane packing (f32:1, bf16:2)
    use_mxu_sum = (C % (8 * packing) == 0)
    acc_shape = (TB * C, 1) if use_mxu_sum else (TB, C)

    kernel = functools.partial(_channel_attention_kernel,
                               hw=HW, thw=THW, tb=TB, c=C,
                               use_mxu_sum=use_mxu_sum)

    tile_bytes = TB * C * THW * itemsize
    # Deeper buffering only when there are many short spatial steps and the
    # extra tile comfortably fits (keeps v7x's 64 MiB VMEM safe).
    deep_pipe = (n_hw >= 8) and (3 * tile_bytes <= (36 << 20))
    n_buf = 3 if deep_pipe else 2
    vmem_limit = int(min(48 * 1024 * 1024,
                         max(16 * 1024 * 1024, n_buf * tile_bytes + (8 << 20))))

    x_spec_kwargs = {}
    if deep_pipe:
        x_spec_kwargs["pipeline_mode"] = pl.Buffered(3)

    out = pl.pallas_call(
        kernel,
        out_shape=jax.ShapeDtypeStruct((B, 1, C), x.dtype),
        grid_spec=pltpu.PrefetchScalarGridSpec(
            num_scalar_prefetch=0,
            grid=(n_b, n_hw),
            in_specs=[
                pl.BlockSpec((TB, C, THW), lambda b, k: (b, 0, k), **x_spec_kwargs),
                pl.BlockSpec((C, Cr), lambda b, k: (0, 0)),   # resident across HW axis
                pl.BlockSpec((Cr, C), lambda b, k: (0, 0)),   # resident across HW axis
            ],
            out_specs=pl.BlockSpec((TB, 1, C), lambda b, k: (b, 0, 0)),
            scratch_shapes=[
                pltpu.VMEM(acc_shape, jnp.float32),   # running sum (f32 accum)
                pltpu.VMEM(acc_shape, jnp.float32),   # running max
            ],
        ),
        compiler_params=pltpu.CompilerParams(
            dimension_semantics=("parallel", "arbitrary"),
            vmem_limit_bytes=vmem_limit,
        ),
    )(x_flat, w1t, w2t)

    return out.reshape(B, C, 1, 1)


if __name__ == "__main__":
    # Shapes consistent with the module: in_planes=64, ratio=16 -> hidden=4
    B, C, H, W = 2, 64, 16, 16
    ratio = 16
    Cr = C // ratio

    key = jax.random.PRNGKey(0)
    kx, k1, k2 = jax.random.split(key, 3)

    x = jax.random.normal(kx, (B, C, H, W), dtype=jnp.float32)
    w1 = jax.random.normal(k1, (Cr, C, 1, 1), dtype=jnp.float32) * 0.1
    w2 = jax.random.normal(k2, (C, Cr, 1, 1), dtype=jnp.float32) * 0.1

    out = channel_attention(x, w1, w2)
    out = jax.block_until_ready(out)

    # Pure-JAX reference of the same math.
    pooled_avg = jnp.mean(x, axis=(2, 3))                     # (B, C)
    pooled_max = jnp.max(x, axis=(2, 3))                      # (B, C)
    w1m = w1.reshape(Cr, C)
    w2m = w2.reshape(C, Cr)

    def ref_mlp(v):
        return jnp.maximum(v @ w1m.T, 0.0) @ w2m.T

    ref = jax.nn.sigmoid(ref_mlp(pooled_avg) + ref_mlp(pooled_max)).reshape(B, C, 1, 1)
    assert out.shape == (B, C, 1, 1)
    assert jnp.allclose(out, ref, atol=1e-5, rtol=1e-5)

    print("KERNEL_OK")
</pallas_src>

<mosaic_0001>
module attributes {stable_mosaic.version = 11 : i64} {
  func.func @_channel_attention_kernel(%arg0: i32, %arg1: i32, %arg2: memref<1x64x256xf32, #tpu.memory_space<vmem>>, %arg3: memref<64x4xf32, #tpu.memory_space<vmem>>, %arg4: memref<4x64xf32, #tpu.memory_space<vmem>>, %arg5: memref<1x1x64xf32, #tpu.memory_space<vmem>>, %arg6: memref<64x1xf32, #tpu.memory_space<vmem>>, %arg7: memref<64x1xf32, #tpu.memory_space<vmem>>) attributes {dimension_semantics = [#tpu.dimension_semantics<parallel>, #tpu.dimension_semantics<arbitrary>], iteration_bounds = array<i64: 2, 1>, scalar_prefetch = 0 : i64, scratch_operands = 2 : i64, tpu.core_type = #tpu.core_type<tc>, window_params = [{transform_indices = @transform_0, window_bounds = array<i64: 1, 64, 256>}, {pipeline_mode = #tpu.pipeline_mode<synchronous>, transform_indices = @transform_1, window_bounds = array<i64: 64, 4>}, {pipeline_mode = #tpu.pipeline_mode<synchronous>, transform_indices = @transform_2, window_bounds = array<i64: 4, 64>}, {transform_indices = @transform_3, window_bounds = array<i64: 1, 1, 64>}]} {
    %c0_i32 = arith.constant 0 : i32
    %0 = arith.cmpi eq, %arg1, %c0_i32 : i32
    %1 = arith.extui %0 : i1 to i32
    %c0_i32_0 = arith.constant 0 : i32
    %2 = arith.cmpi ne, %1, %c0_i32_0 : i32
    scf.if %2 {
      %cst_15 = arith.constant 0.000000e+00 : f32
      %19 = vector.broadcast %cst_15 : f32 to vector<64x1xf32>
      %c0_16 = arith.constant 0 : index
      %c0_17 = arith.constant 0 : index
      %20 = vector.load %arg6[%c0_16, %c0_17] : memref<64x1xf32, #tpu.memory_space<vmem>>, vector<64x1xf32>
      tpu.vector_store %arg6[%c0_16, %c0_17], %19 {strides = array<i32>} : memref<64x1xf32, #tpu.memory_space<vmem>>, vector<64x1xf32>,
      %cst_18 = arith.constant 0xFF800000 : f32
      %21 = vector.broadcast %cst_18 : f32 to vector<64x1xf32>
      %c0_19 = arith.constant 0 : index
      %c0_20 = arith.constant 0 : index
      %22 = vector.load %arg7[%c0_19, %c0_20] : memref<64x1xf32, #tpu.memory_space<vmem>>, vector<64x1xf32>
      tpu.vector_store %arg7[%c0_19, %c0_20], %21 {strides = array<i32>} : memref<64x1xf32, #tpu.memory_space<vmem>>, vector<64x1xf32>,
    } else {
    }
    %c0 = arith.constant 0 : index
    %c0_1 = arith.constant 0 : index
    %c0_2 = arith.constant 0 : index
    %3 = vector.load %arg2[%c0, %c0_1, %c0_2] : memref<1x64x256xf32, #tpu.memory_space<vmem>>, vector<1x64x256xf32>
    %cst = arith.constant 1.000000e+00 : f32
    %4 = vector.broadcast %cst : f32 to vector<256x1xf32>
    %c0_3 = arith.constant 0 : index
    %c0_4 = arith.constant 0 : index
    %5 = vector.load %arg6[%c0_3, %c0_4] : memref<64x1xf32, #tpu.memory_space<vmem>>, vector<64x1xf32>
    %6 = vector.shape_cast %3 : vector<1x64x256xf32> to vector<64x256xf32>
    %cst_5 = arith.constant dense<0.000000e+00> : vector<64x1xf32>
    %7 = tpu.matmul %6, %4, %cst_5 {dimension_numbers = #tpu.dot_dimension_numbers<[1], [0], [0], [1], [0, 0, 1, 1], [], []>} : vector<64x256xf32>, vector<256x1xf32>, vector<64x1xf32> -> vector<64x1xf32>
    %8 = arith.addf %5, %7 : vector<64x1xf32>
    %c0_6 = arith.constant 0 : index
    %c0_7 = arith.constant 0 : index
    %9 = vector.load %arg6[%c0_6, %c0_7] : memref<64x1xf32, #tpu.memory_space<vmem>>, vector<64x1xf32>
    tpu.vector_store %arg6[%c0_6, %c0_7], %8 {strides = array<i32>} : memref<64x1xf32, #tpu.memory_space<vmem>>, vector<64x1xf32>,
    %10 = vector.shape_cast %3 : vector<1x64x256xf32> to vector<64x256xf32>
    %cst_8 = arith.constant dense<0xFF800000> : vector<64xf32>
    %11 = vector.multi_reduction <maximumf>, %10, %cst_8 [1] : vector<64x256xf32> to vector<64xf32>
    %12 = vector.shape_cast %11 : vector<64xf32> to vector<64x1xf32>
    %c0_9 = arith.constant 0 : index
    %c0_10 = arith.constant 0 : index
    %13 = vector.load %arg7[%c0_9, %c0_10] : memref<64x1xf32, #tpu.memory_space<vmem>>, vector<64x1xf32>
    %14 = arith.maximumf %13, %12 : vector<64x1xf32>
    %c0_11 = arith.constant 0 : index
    %c0_12 = arith.constant 0 : index
    %15 = vector.load %arg7[%c0_11, %c0_12] : memref<64x1xf32, #tpu.memory_space<vmem>>, vector<64x1xf32>
    tpu.vector_store %arg7[%c0_11, %c0_12], %14 {strides = array<i32>} : memref<64x1xf32, #tpu.memory_space<vmem>>, vector<64x1xf32>,
    %c0_i32_13 = arith.constant 0 : i32
    %16 = arith.cmpi eq, %arg1, %c0_i32_13 : i32
    %17 = arith.extui %16 : i1 to i32
    %c0_i32_14 = arith.constant 0 : i32
    %18 = arith.cmpi ne, %17, %c0_i32_14 : i32
    scf.if %18 {
      %c0_15 = arith.constant 0 : index
      %c0_16 = arith.constant 0 : index
      %19 = vector.load %arg6[%c0_15, %c0_16] : memref<64x1xf32, #tpu.memory_space<vmem>>, vector<64x1xf32>
      %c0_17 = arith.constant 0 : index
      %c0_18 = arith.constant 0 : index
      %20 = vector.load %arg7[%c0_17, %c0_18] : memref<64x1xf32, #tpu.memory_space<vmem>>, vector<64x1xf32>
      %21 = vector.shape_cast %19 : vector<64x1xf32> to vector<1x64xf32>
      %22 = vector.shape_cast %20 : vector<64x1xf32> to vector<1x64xf32>
      %cst_19 = arith.constant 3.906250e-03 : f32
      %23 = vector.broadcast %cst_19 : f32 to vector<1x64xf32>
      %24 = arith.mulf %21, %23 : vector<1x64xf32>
      %25 = tpu.concatenate %24, %22 in 0 : vector<1x64xf32>, vector<1x64xf32> -> vector<2x64xf32>
      %c0_20 = arith.constant 0 : index
      %c0_21 = arith.constant 0 : index
      %26 = vector.load %arg3[%c0_20, %c0_21] : memref<64x4xf32, #tpu.memory_space<vmem>>, vector<64x4xf32>
      %cst_22 = arith.constant dense<0.000000e+00> : vector<2x4xf32>
      %27 = tpu.matmul %25, %26, %cst_22 {dimension_numbers = #tpu.dot_dimension_numbers<[1], [0], [0], [1], [0, 0, 1, 1], [], []>} : vector<2x64xf32>, vector<64x4xf32>, vector<2x4xf32> -> vector<2x4xf32>
      %cst_23 = arith.constant 0.000000e+00 : f32
      %28 = vector.broadcast %cst_23 : f32 to vector<2x4xf32>
      %29 = arith.maximumf %27, %28 : vector<2x4xf32>
      %c0_24 = arith.constant 0 : index
      %c0_25 = arith.constant 0 : index
      %30 = vector.load %arg4[%c0_24, %c0_25] : memref<4x64xf32, #tpu.memory_space<vmem>>, vector<4x64xf32>
      %cst_26 = arith.constant dense<0.000000e+00> : vector<2x64xf32>
      %31 = tpu.matmul %29, %30, %cst_26 {dimension_numbers = #tpu.dot_dimension_numbers<[1], [0], [0], [1], [0, 0, 1, 1], [], []>} : vector<2x4xf32>, vector<4x64xf32>, vector<2x64xf32> -> vector<2x64xf32>
      %32 = vector.extract_strided_slice %31 {offsets = [0, 0], sizes = [1, 64], strides = [1, 1]} : vector<2x64xf32> to vector<1x64xf32>
      %33 = vector.extract_strided_slice %31 {offsets = [1, 0], sizes = [1, 64], strides = [1, 1]} : vector<2x64xf32> to vector<1x64xf32>
      %34 = arith.addf %32, %33 : vector<1x64xf32>
      %35 = arith.negf %34 : vector<1x64xf32>
      %36 = math.exp %35 : vector<1x64xf32>
      %cst_27 = arith.constant 1.000000e+00 : f32
      %37 = vector.broadcast %cst_27 : f32 to vector<1x64xf32>
      %38 = arith.addf %37, %36 : vector<1x64xf32>
      %39 = arith.divf %37, %38 : vector<1x64xf32>
      %40 = vector.shape_cast %39 : vector<1x64xf32> to vector<1x1x64xf32>
      %c0_28 = arith.constant 0 : index
      %c0_29 = arith.constant 0 : index
      %c0_30 = arith.constant 0 : index
      %41 = vector.load %arg5[%c0_28, %c0_29, %c0_30] : memref<1x1x64xf32, #tpu.memory_space<vmem>>, vector<1x1x64xf32>
      tpu.vector_store %arg5[%c0_28, %c0_29, %c0_30], %40 {strides = array<i32>} : memref<1x1x64xf32, #tpu.memory_space<vmem>>, vector<1x1x64xf32>,
    } else {
    }
    return
  }
  func.func @transform_0(%arg0: i32, %arg1: i32) -> (i32, i32, i32) {
    %c0_i32 = arith.constant 0 : i32
    %c0_i32_0 = arith.constant 0 : i32
    return %arg0, %c0_i32, %arg1 : i32, i32, i32
  }
  func.func @transform_1(%arg0: i32, %arg1: i32) -> (i32, i32) {
    %c0_i32 = arith.constant 0 : i32
    %c0_i32_0 = arith.constant 0 : i32
    %c0_i32_1 = arith.constant 0 : i32
    return %c0_i32, %c0_i32_0 : i32, i32
  }
  func.func @transform_2(%arg0: i32, %arg1: i32) -> (i32, i32) {
    %c0_i32 = arith.constant 0 : i32
    %c0_i32_0 = arith.constant 0 : i32
    %c0_i32_1 = arith.constant 0 : i32
    return %c0_i32, %c0_i32_0 : i32, i32
  }
  func.func @transform_3(%arg0: i32, %arg1: i32) -> (i32, i32, i32) {
    %c0_i32 = arith.constant 0 : i32
    %c0_i32_0 = arith.constant 0 : i32
    %c0_i32_1 = arith.constant 0 : i32
    return %arg0, %c0_i32, %c0_i32_0 : i32, i32, i32
  }
}

</mosaic_0001>

<llo_original>
// kernel: tpu_custom_call.1
$region0: #{tpu_custom_call.1}
  #allocation0 [shape = 'u32[]', space=smem, size = 0x4, offset = 0x4, fixed_abs, tag = 'smem constant byte address 0x4 - core index']
  #allocation1 [shape = 'u32[144,128]{1,0:T(1,128)}', space=vmem, size = 0x12000, scoped, tag = 'internal scratch']
  #allocation2 [shape = 'f32[64,1]{1,0:T(8,128)}', space=vmem, size = 0x8000, scoped, tag = 'scratch operand']
  #allocation3 [shape = 'f32[64,1]{1,0:T(8,128)}', space=vmem, size = 0x8000, scoped, tag = 'scratch operand']
  %s0 = inlined_call_operand.hbm [shape: f32[2,64,256], index: 0, kind: input, shape index: {}]
  %s1 = inlined_call_operand.vmem [shape: f32[64,4], index: 1, kind: input, shape index: {}]
  %s2 = inlined_call_operand.vmem [shape: f32[4,64], index: 2, kind: input, shape index: {}]
  %s3 = inlined_call_operand.hbm [shape: f32[2,1,64], index: 3, kind: output, shape index: {}]
  %s4 = sld [smem:[#allocation0]]
  $region57: #{tpu_custom_call.1} parent=0
    _
  %s6 = ssub.s32 1, %s4
  %s7 = scalar_select 0, %s6, %s4
  $region1: #{tpu_custom_call.1} parent=0
    #allocation4 [shape = 'u8[131072]{0}', space=vmem, size = 0x20000, scoped, tag = 'input window, operand 0']
    #allocation5 [shape = 's32[2]{0}', space=sflag, size = 0x8, scoped, tag = 'scoped memory for tpu_custom_call.1']
    #allocation6 [shape = 's32[2]{0}', space=sflag, size = 0x8, scoped, tag = 'scoped memory for tpu_custom_call.1']
    #allocation7 [shape = 'u8[1024]{0}', space=vmem, size = 0x400, scoped, tag = 'output window, operand 0']
    %8 = vsyncpa [#allocation5], 0
    %s9 = scalar_lea.sflag [#allocation5], 1
    %10 = vsyncpa %s9, 0
    %11 = vsyncpa [#allocation6], 0
    %s12 = scalar_lea.sflag [#allocation6], 1
    %13 = vsyncpa %s12, 0
    loop: start=0, step=1, limit=4
    $region2: #{tpu_custom_call.1} parent=1 // loop_pre_header
      _
    $region3: #{tpu_custom_call.1} parent=1 // loop_header
      %s15 = sphi 0, %s19
      %p16 = scmp.ge.s32.totalorder %s15, 4
      %s22 = sphi 0, %s34
      %s23 = sphi 0, %s30
      %s24 = sphi 0, %s22
      %s25 = sphi 0, %s23
      %s26 = sphi 0, %s24
      %s27 = sphi 0, %s25
      %s39 = sphi 0, %s41
      %s42 = sphi 0, %s39
      %s43 = sphi 0, %s42
      %s59 = sphi 0, %s43
      %s63 = sphi 0, %s63
      %s65 = sphi 0, %s63
      %s66 = sphi 0, %s65
      %s80 = sphi 0, %s66
      %s84 = sphi 0, %s84
      %s86 = sphi 0, %s84
      %s87 = sphi 0, %s86
      %s101 = sphi 0, %s87
      %s107 = sphi 0, %s109
      %s110 = sphi 0, %s107
      %s111 = sphi 0, %s110
      %s127 = sphi 0, %s111
    $region4: #{tpu_custom_call.1} parent=1 // loop_header_branch
      %18 = sbr.rel (%p16) target = $region8
    $region5: #{tpu_custom_call.1} parent=1 // loop_body
      %s20 = ssub.s32 %s15, 1
      %s21 = ssub.s32 %s15, 2
      %s28 = sadd.s32 1, %s23
      %p29 = scmp.ge.s32.totalorder %s28, 1
      %s30 = scalar_select %p29, 0, %s28
      %s31 = sadd.s32 1, %s22
      %s32 = scalar_select %p29, %s31, %s22
      %p33 = scmp.ge.s32.totalorder %s32, 2
      %s34 = scalar_select %p33, 0, %s32
      %s35 = ssub.s32 %s22, %s34
      %s36 = ssub.s32 %s23, %s30
      %s37 = sor.u32 %s35, %s36
      %p38 = scmp.eq.s32.totalorder %s37, 0
      %s40 = sadd.s32 %s39, 1
      %s41 = scalar_select %p38, %s39, %s40
      %p44 = pneg %p38
      %p45 = scmp.eq.s32.totalorder %s15, 1
      %p46 = por %p44, %p45
      %p47 = scmp.ne.s32.totalorder %s39, %s42
      %p48 = scmp.eq.s32.totalorder %s15, 0
      %p49 = por %p47, %p48
      %p50 = scmp.ne.s32.totalorder %s39, %s42
      %p51 = scmp.eq.s32.totalorder %s20, 1
      %p52 = por %p50, %p51
      %p53 = scmp.ne.s32.totalorder %s42, %s43
      %p54 = scmp.eq.s32.totalorder %s20, 0
      %p55 = por %p53, %p54
      %p56 = scmp.ne.s32.totalorder %s42, %s43
      %p57 = scmp.eq.s32.totalorder %s21, 1
      %p58 = por %p56, %p57
      %p60 = scmp.ne.s32.totalorder %s43, %s59
      %p61 = scmp.eq.s32.totalorder %s21, 0
      %p62 = por %p60, %p61
      %s64 = sadd.s32 %s63, 1
      %p67 = scmp.eq.s32.totalorder %s15, 1
      %p68 = scmp.ne.s32.totalorder %s63, %s65
      %p69 = scmp.eq.s32.totalorder %s15, 0
      %p70 = por %p68, %p69
      %p71 = scmp.ne.s32.totalorder %s63, %s65
      %p72 = scmp.eq.s32.totalorder %s20, 1
      %p73 = por %p71, %p72
      %p74 = scmp.ne.s32.totalorder %s65, %s66
      %p75 = scmp.eq.s32.totalorder %s20, 0
      %p76 = por %p74, %p75
      %p77 = scmp.ne.s32.totalorder %s65, %s66
      %p78 = scmp.eq.s32.totalorder %s21, 1
      %p79 = por %p77, %p78
      %p81 = scmp.ne.s32.totalorder %s66, %s80
      %p82 = scmp.eq.s32.totalorder %s21, 0
      %p83 = por %p81, %p82
      %s85 = sadd.s32 %s84, 1
      %p88 = scmp.eq.s32.totalorder %s15, 1
      %p89 = scmp.ne.s32.totalorder %s84, %s86
      %p90 = scmp.eq.s32.totalorder %s15, 0
      %p91 = por %p89, %p90
      %p92 = scmp.ne.s32.totalorder %s84, %s86
      %p93 = scmp.eq.s32.totalorder %s20, 1
      %p94 = por %p92, %p93
      %p95 = scmp.ne.s32.totalorder %s86, %s87
      %p96 = scmp.eq.s32.totalorder %s20, 0
      %p97 = por %p95, %p96
      %p98 = scmp.ne.s32.totalorder %s86, %s87
      %p99 = scmp.eq.s32.totalorder %s21, 1
      %p100 = por %p98, %p99
      %p102 = scmp.ne.s32.totalorder %s87, %s101
      %p103 = scmp.eq.s32.totalorder %s21, 0
      %p104 = por %p102, %p103
      %s105 = ssub.s32 %s22, %s34
      %p106 = scmp.eq.s32.totalorder %s105, 0
      %s108 = sadd.s32 %s107, 1
      %s109 = scalar_select %p106, %s107, %s108
      %p112 = pneg %p106
      %p113 = scmp.eq.s32.totalorder %s15, 1
      %p114 = por %p112, %p113
      %p115 = scmp.ne.s32.totalorder %s107, %s110
      %p116 = scmp.eq.s32.totalorder %s15, 0
      %p117 = por %p115, %p116
      %p118 = scmp.ne.s32.totalorder %s107, %s110
      %p119 = scmp.eq.s32.totalorder %s20, 1
      %p120 = por %p118, %p119
      %p121 = scmp.ne.s32.totalorder %s110, %s111
      %p122 = scmp.eq.s32.totalorder %s20, 0
      %p123 = por %p121, %p122
      %p124 = scmp.ne.s32.totalorder %s110, %s111
      %p125 = scmp.eq.s32.totalorder %s21, 1
      %p126 = por %p124, %p125
      %p128 = scmp.ne.s32.totalorder %s111, %s127
      %p129 = scmp.eq.s32.totalorder %s21, 0
      %p130 = por %p128, %p129
      %p131 = scmp.le.s32.totalorder 1, %s15
      %p132 = scmp.lt.s32.totalorder %s15, 3
      %p133 = pnand %p131, %p132
      %p134 = pneg %p133
      // Predicated region
      $region9: #{tpu_custom_call.1} parent=5 // pred_check
        _
      $region10: #{tpu_custom_call.1} parent=5 // pred_check_branch
        %136 = sbr.rel (%p133) target = $region12
      $region11: #{tpu_custom_call.1} parent=5 // pred_region
        %s137 = ssub.s32 %s15, 1
        // Predicated region
        $region13: #{tpu_custom_call.1} parent=11 // pred_check
          %p138 = pneg %p76
        $region14: #{tpu_custom_call.1} parent=11 // pred_check_branch
          %140 = sbr.rel (%p138) target = $region16
        $region15: #{tpu_custom_call.1} parent=11 // pred_region
          _
        $region16: #{tpu_custom_call.1} parent=11 // pred_fallthru
          _
        // Predicated region
        $region17: #{tpu_custom_call.1} parent=11 // pred_check
          %p141 = pneg %p97
        $region18: #{tpu_custom_call.1} parent=11 // pred_check_branch
          %143 = sbr.rel (%p141) target = $region20
        $region19: #{tpu_custom_call.1} parent=11 // pred_region
          _
        $region20: #{tpu_custom_call.1} parent=11 // pred_fallthru
          _
      $region12: #{tpu_custom_call.1} parent=5 // pred_fallthru
        _
      %p144 = scmp.lt.s32.totalorder %s15, 2
      // Predicated region
      $region21: #{tpu_custom_call.1} parent=5 // pred_check
        %p145 = pneg %p144
      $region22: #{tpu_custom_call.1} parent=5 // pred_check_branch
        %147 = sbr.rel (%p145) target = $region24
      $region23: #{tpu_custom_call.1} parent=5 // pred_region
        // Predicated region
        $region25: #{tpu_custom_call.1} parent=23 // pred_check
          %p148 = pneg %p49
        $region26: #{tpu_custom_call.1} parent=23 // pred_check_branch
          %150 = sbr.rel (%p148) target = $region28
        $region27: #{tpu_custom_call.1} parent=23 // pred_region
          %s151 = sand.u32 %s39, 1
          %s152 = scalar_lea.sflag [#allocation5], %s151
          %s153 = sand.u32 %s39, 1
          %s154 = smul.addr %s153, 128
          %s155 = scalar_lea.vmem [#allocation4], %s154
          %s156 = smul.u32 2, %s23
          %s158 = ssub.s32 2048, 2048
          %159 = vsyncadd %s152, %s158
          %s160 = smul.addr %s22, 16
          %s161 = sadd.s32 %s156, %s160
          %s162 = smul.addr %s161, 128
          %s163 = scalar_lea.hbm %s0, %s162
          %s164 = sshll.u32 %s155, 4
          %s165 = int_to_ptr.vmem [resolvable:$true] %s164
          %170 = dma.hbm_to_vmem [thread:$0]  %s163, 2048, %s165, %s152, 256, 256, 16
        $region28: #{tpu_custom_call.1} parent=23 // pred_fallthru
          _
      $region24: #{tpu_custom_call.1} parent=5 // pred_fallthru
        _
      %p171 = scmp.le.s32.totalorder 1, %s15
      %p172 = scmp.lt.s32.totalorder %s15, 3
      %p173 = pnand %p171, %p172
      %p174 = pneg %p173
      // Predicated region
      $region29: #{tpu_custom_call.1} parent=5 // pred_check
        _
      $region30: #{tpu_custom_call.1} parent=5 // pred_check_branch
        %176 = sbr.rel (%p173) target = $region32
      $region31: #{tpu_custom_call.1} parent=5 // pred_region
        %s177 = ssub.s32 %s15, 1
        %s178 = sand.u32 %s42, 1
        %s179 = scalar_lea.sflag [#allocation5], %s178
        %s180 = sand.u32 %s42, 1
        %s181 = smul.addr %s180, 128
        %s182 = scalar_lea.vmem [#allocation4], %s181
        // Predicated region
        $region33: #{tpu_custom_call.1} parent=31 // pred_check
          %p183 = pneg %p55
        $region34: #{tpu_custom_call.1} parent=31 // pred_check_branch
          %185 = sbr.rel (%p183) target = $region36
        $region35: #{tpu_custom_call.1} parent=31 // pred_region
          %186 = dma.done %s179, 2048
        $region36: #{tpu_custom_call.1} parent=31 // pred_fallthru
          _
        %s187 = sand.u32 %s42, 1
        %s188 = scalar_lea.sflag [#allocation5], %s187
        %s189 = sand.u32 %s42, 1
        %s190 = smul.addr %s189, 128
        %s191 = scalar_lea.vmem [#allocation4], %s190
        %p192 = pneg %p55
        %p193 = pneg %p52
        %p194 = pneg %p76
        %p195 = pneg %p73
        %p196 = pneg %p97
        %p197 = pneg %p94
        %p198 = pneg %p123
        %p199 = pneg %p120
        %s200 = sand.u32 %s110, 1
        %s201 = scalar_lea.sflag [#allocation6], %s200
        %s202 = sand.u32 %s110, 1
        %s203 = scalar_lea.vmem [#allocation7], %s202
        %s204 = smul.u32 2, %s25
        %p205 = scmp.eq.s32.totalorder %s25, 0
        // Predicated region
        $region37: #{tpu_custom_call.1} parent=31 // pred_check
          %p206 = pneg %p205
        $region38: #{tpu_custom_call.1} parent=31 // pred_check_branch
          %208 = sbr.rel (%p206) target = $region40
        $region39: #{tpu_custom_call.1} parent=31 // pred_region
          %vm209 = vcmask 7168
          %210 = vst.msk [vmem:[#allocation2] sm:$0xff] %vm209, 0.0
          %211 = vst.msk [vmem:[#allocation2 + $0x8] sm:$0xff] %vm209, 0.0
          %212 = vst.msk [vmem:[#allocation2 + $0x10] sm:$0xff] %vm209, 0.0
          %213 = vst.msk [vmem:[#allocation2 + $0x18] sm:$0xff] %vm209, 0.0
          %214 = vst.msk [vmem:[#allocation2 + $0x20] sm:$0xff] %vm209, 0.0
          %215 = vst.msk [vmem:[#allocation2 + $0x28] sm:$0xff] %vm209, 0.0
          %216 = vst.msk [vmem:[#allocation2 + $0x30] sm:$0xff] %vm209, 0.0
          %217 = vst.msk [vmem:[#allocation2 + $0x38] sm:$0xff] %vm209, 0.0
          %218 = vst.msk [vmem:[#allocation3] sm:$0xff] %vm209, -inf
          %219 = vst.msk [vmem:[#allocation3 + $0x8] sm:$0xff] %vm209, -inf
          %220 = vst.msk [vmem:[#allocation3 + $0x10] sm:$0xff] %vm209, -inf
          %221 = vst.msk [vmem:[#allocation3 + $0x18] sm:$0xff] %vm209, -inf
          %222 = vst.msk [vmem:[#allocation3 + $0x20] sm:$0xff] %vm209, -inf
          %223 = vst.msk [vmem:[#allocation3 + $0x28] sm:$0xff] %vm209, -inf
          %224 = vst.msk [vmem:[#allocation3 + $0x30] sm:$0xff] %vm209, -inf
          %225 = vst.msk [vmem:[#allocation3 + $0x38] sm:$0xff] %vm209, -inf
        $region40: #{tpu_custom_call.1} parent=31 // pred_fallthru
          _
        %v226 = vld [vmem:[%s182] sm:$0xff]
        %v227 = vld [vmem:[%s182 + $0x8] sm:$0xff]
        %v228 = vld [vmem:[%s182 + $0x10] sm:$0xff]
        %v229 = vld [vmem:[%s182 + $0x18] sm:$0xff]
        %v230 = vld [vmem:[%s182 + $0x20] sm:$0xff]
        %v231 = vld [vmem:[%s182 + $0x28] sm:$0xff]
        %v232 = vld [vmem:[%s182 + $0x30] sm:$0xff]
        %v233 = vld [vmem:[%s182 + $0x38] sm:$0xff]
        %v234 = vld [vmem:[%s182 + $0x40] sm:$0xff]
        %v235 = vld [vmem:[%s182 + $0x48] sm:$0xff]
        %v236 = vld [vmem:[%s182 + $0x50] sm:$0xff]
        %v237 = vld [vmem:[%s182 + $0x58] sm:$0xff]
        %v238 = vld [vmem:[%s182 + $0x60] sm:$0xff]
        %v239 = vld [vmem:[%s182 + $0x68] sm:$0xff]
        %v240 = vld [vmem:[%s182 + $0x70] sm:$0xff]
        %v241 = vld [vmem:[%s182 + $0x78] sm:$0xff]
        %v242 = vld [vmem:[#allocation2] sm:$0xff]
        %v243 = vld [vmem:[#allocation2 + $0x8] sm:$0xff]
        %v244 = vld [vmem:[#allocation2 + $0x10] sm:$0xff]
        %v245 = vld [vmem:[#allocation2 + $0x18] sm:$0xff]
        %v246 = vld [vmem:[#allocation2 + $0x20] sm:$0xff]
        %v247 = vld [vmem:[#allocation2 + $0x28] sm:$0xff]
        %v248 = vld [vmem:[#allocation2 + $0x30] sm:$0xff]
        %v249 = vld [vmem:[#allocation2 + $0x38] sm:$0xff]
        %250 = vmatprep.subr.mxu0 0.0
        %251 = vmatpush1.msra.mxu0 1.0
        %252 = vmatprep.subr.mxu0 0.0
        %253 = vmatpush1.msra.mxu0 1.0
        %254 = vmatprep.subr.mxu0 0.0
        %255 = vmatpush1.msra.mxu0 1.0
        %256 = vmatprep.subr.mxu0 0.0
        %257 = vmatpush1.msra.mxu0 1.0
        %258 = vmatprep.subr.mxu0 0.0
        %259 = vmatpush1.msra.mxu0 1.0
        %260 = vmatprep.subr.mxu0 0.0
        %261 = vmatpush1.msra.mxu0 1.0
        %262 = vmatprep.subr.mxu0 0.0
        %263 = vmatpush1.msra.mxu0 1.0
        %264 = vmatprep.subr.mxu0 0.0
        %265 = vmatpush1.msra.mxu0 1.0
        %266 = vmatprep.subr.mxu0 0.0
        %267 = vmatpush1.msra.mxu0 1.0
        %268 = vmatprep.subr.mxu0 0.0
        %269 = vmatpush1.msra.mxu0 1.0
        %270 = vmatprep.subr.mxu0 0.0
        %271 = vmatpush1.msra.mxu0 1.0
        %272 = vmatprep.subr.mxu0 0.0
        %273 = vmatpush1.msra.mxu0 1.0
        %274 = vmatprep.subr.mxu0 0.0
        %275 = vmatpush1.msra.mxu0 1.0
        %276 = vmatprep.subr.mxu0 0.0
        %277 = vmatpush1.msra.mxu0 1.0
        %278 = vmatprep.subr.mxu0 0.0
        %279 = vmatpush1.msra.mxu0 1.0
        %280 = vmatprep.subr.mxu0 0.0
        %281 = vmatpush1.msra.mxu0 1.0
        %282 = vmatprep.subr.mxu0 0.0
        %283 = vmatpush2.msra.mxu0 1.0
        %284 = vmatprep.subr.mxu0 0.0
        %285 = vmatpush2.msra.mxu0 1.0
        %286 = vmatprep.subr.mxu0 0.0
        %287 = vmatpush2.msra.mxu0 1.0
        %288 = vmatprep.subr.mxu0 0.0
        %289 = vmatpush2.msra.mxu0 1.0
        %290 = vmatprep.subr.mxu0 0.0
        %291 = vmatpush2.msra.mxu0 1.0
        %292 = vmatprep.subr.mxu0 0.0
        %293 = vmatpush2.msra.mxu0 1.0
        %294 = vmatprep.subr.mxu0 0.0
        %295 = vmatpush2.msra.mxu0 1.0
        %296 = vmatprep.subr.mxu0 0.0
        %297 = vmatpush2.msra.mxu0 1.0
        %298 = vmatprep.subr.mxu0 0.0
        %299 = vmatpush2.msra.mxu0 1.0
        %300 = vmatprep.subr.mxu0 0.0
        %301 = vmatpush2.msra.mxu0 1.0
        %302 = vmatprep.subr.mxu0 0.0
        %303 = vmatpush2.msra.mxu0 1.0
        %304 = vmatprep.subr.mxu0 0.0
        %305 = vmatpush2.msra.mxu0 1.0
        %306 = vmatprep.subr.mxu0 0.0
        %307 = vmatpush2.msra.mxu0 1.0
        %308 = vmatprep.subr.mxu0 0.0
        %309 = vmatpush2.msra.mxu0 1.0
        %310 = vmatprep.subr.mxu0 0.0
        %311 = vmatpush2.msra.mxu0 1.0
        %312 = vmatprep.subr.mxu0 0.0
        %313 = vmatpush2.msra.mxu0 1.0
        %314 = vmatprep.mubr.f32.mxu0 %v227
        %315 = vmatmul.mubr.f32.gmra.mxu0 %v226
        %v316 = vpop.f32.mrf.mxu0
        %v317 = vadd.f32 0.0, %v316
        %v318 = vpop.f32.mrf.mxu0
        %319 = vmatprep.mubr.f32.mxu0 %v229
        %320 = vmatmul.mubr.f32.gmra.mxu0 %v228
        %v321 = vpop.f32.mrf.mxu0
        %v322 = vadd.f32 0.0, %v321
        %v323 = vpop.f32.mrf.mxu0
        %324 = vmatprep.mubr.f32.mxu0 %v231
        %325 = vmatmul.mubr.f32.gmra.mxu0 %v230
        %v326 = vpop.f32.mrf.mxu0
        %v327 = vadd.f32 0.0, %v326
        %v328 = vpop.f32.mrf.mxu0
        %329 = vmatprep.mubr.f32.mxu0 %v233
        %330 = vmatmul.mubr.f32.gmra.mxu0 %v232
        %v331 = vpop.f32.mrf.mxu0
        %v332 = vadd.f32 0.0, %v331
        %v333 = vpop.f32.mrf.mxu0
        %334 = vmatprep.mubr.f32.mxu0 %v235
        %335 = vmatmul.mubr.f32.gmra.mxu0 %v234
        %v336 = vpop.f32.mrf.mxu0
        %v337 = vadd.f32 0.0, %v336
        %v338 = vpop.f32.mrf.mxu0
        %339 = vmatprep.mubr.f32.mxu0 %v237
        %340 = vmatmul.mubr.f32.gmra.mxu0 %v236
        %v341 = vpop.f32.mrf.mxu0
        %v342 = vadd.f32 0.0, %v341
        %v343 = vpop.f32.mrf.mxu0
        %344 = vmatprep.mubr.f32.mxu0 %v239
        %345 = vmatmul.mubr.f32.gmra.mxu0 %v238
        %v346 = vpop.f32.mrf.mxu0
        %v347 = vadd.f32 0.0, %v346
        %v348 = vpop.f32.mrf.mxu0
        %349 = vmatprep.mubr.f32.mxu0 %v241
        %350 = vmatmul.mubr.f32.gmra.mxu0 %v240
        %v351 = vpop.f32.mrf.mxu0
        %v352 = vadd.f32 0.0, %v351
        %v353 = vpop.f32.mrf.mxu0
        %354 = vdwg.mxu0
        %v355 = vadd.f32 %v242, %v317
        %v356 = vadd.f32 %v243, %v322
        %v357 = vadd.f32 %v244, %v327
        %v358 = vadd.f32 %v245, %v332
        %v359 = vadd.f32 %v246, %v337
        %v360 = vadd.f32 %v247, %v342
        %v361 = vadd.f32 %v248, %v347
        %v362 = vadd.f32 %v249, %v352
        %vm363 = vcmask 7168
        %364 = vst.msk [vmem:[#allocation2] sm:$0xff] %vm363, %v355
        %365 = vst.msk [vmem:[#allocation2 + $0x8] sm:$0xff] %vm363, %v356
        %366 = vst.msk [vmem:[#allocation2 + $0x10] sm:$0xff] %vm363, %v357
        %367 = vst.msk [vmem:[#allocation2 + $0x18] sm:$0xff] %vm363, %v358
        %368 = vst.msk [vmem:[#allocation2 + $0x20] sm:$0xff] %vm363, %v359
        %369 = vst.msk [vmem:[#allocation2 + $0x28] sm:$0xff] %vm363, %v360
        %370 = vst.msk [vmem:[#allocation2 + $0x30] sm:$0xff] %vm363, %v361
        %371 = vst.msk [vmem:[#allocation2 + $0x38] sm:$0xff] %vm363, %v362
        %v372 = vmax.f32 %v226, %v227
        %373 = vmax.xlane.f32.xlu0 %v372
        %v374 = vpop.xlane.xlu0 %373
        %v375 = vmax.f32 %v228, %v229
        %376 = vmax.xlane.f32.xlu0 %v375
        %v377 = vpop.xlane.xlu0 %376
        %v378 = vmax.f32 %v230, %v231
        %379 = vmax.xlane.f32.xlu0 %v378
        %v380 = vpop.xlane.xlu0 %379
        %v381 = vmax.f32 %v232, %v233
        %382 = vmax.xlane.f32.xlu0 %v381
        %v383 = vpop.xlane.xlu0 %382
        %v384 = vmax.f32 %v234, %v235
        %385 = vmax.xlane.f32.xlu0 %v384
        %v386 = vpop.xlane.xlu0 %385
        %v387 = vmax.f32 %v236, %v237
        %388 = vmax.xlane.f32.xlu0 %v387
        %v389 = vpop.xlane.xlu0 %388
        %v390 = vmax.f32 %v238, %v239
        %391 = vmax.xlane.f32.xlu0 %v390
        %v392 = vpop.xlane.xlu0 %391
        %v393 = vmax.f32 %v240, %v241
        %394 = vmax.xlane.f32.xlu0 %v393
        %v395 = vpop.xlane.xlu0 %394
        %v396 = vld [vmem:[#allocation3] sm:$0xff]
        %v397 = vld [vmem:[#allocation3 + $0x8] sm:$0xff]
        %v398 = vld [vmem:[#allocation3 + $0x10] sm:$0xff]
        %v399 = vld [vmem:[#allocation3 + $0x18] sm:$0xff]
        %v400 = vld [vmem:[#allocation3 + $0x20] sm:$0xff]
        %v401 = vld [vmem:[#allocation3 + $0x28] sm:$0xff]
        %v402 = vld [vmem:[#allocation3 + $0x30] sm:$0xff]
        %v403 = vld [vmem:[#allocation3 + $0x38] sm:$0xff]
        %v404 = vmax.f32 %v396, %v374
        %v405 = vmax.f32 %v397, %v377
        %v406 = vmax.f32 %v398, %v380
        %v407 = vmax.f32 %v399, %v383
        %v408 = vmax.f32 %v400, %v386
        %v409 = vmax.f32 %v401, %v389
        %v410 = vmax.f32 %v402, %v392
        %v411 = vmax.f32 %v403, %v395
        %412 = vst.msk [vmem:[#allocation3] sm:$0xff] %vm363, %v404
        %413 = vst.msk [vmem:[#allocation3 + $0x8] sm:$0xff] %vm363, %v405
        %414 = vst.msk [vmem:[#allocation3 + $0x10] sm:$0xff] %vm363, %v406
        %415 = vst.msk [vmem:[#allocation3 + $0x18] sm:$0xff] %vm363, %v407
        %416 = vst.msk [vmem:[#allocation3 + $0x20] sm:$0xff] %vm363, %v408
        %417 = vst.msk [vmem:[#allocation3 + $0x28] sm:$0xff] %vm363, %v409
        %418 = vst.msk [vmem:[#allocation3 + $0x30] sm:$0xff] %vm363, %v410
        %419 = vst.msk [vmem:[#allocation3 + $0x38] sm:$0xff] %vm363, %v411
        // Predicated region
        $region41: #{tpu_custom_call.1} parent=31 // pred_check
          %p420 = pneg %p205
        $region42: #{tpu_custom_call.1} parent=31 // pred_check_branch
          %422 = sbr.rel (%p420) target = $region44
        $region43: #{tpu_custom_call.1} parent=31 // pred_region
          %v423 = vld [vmem:[#allocation2] sm:$0xff]
          %v424 = vld [vmem:[#allocation2 + $0x8] sm:$0xff]
          %v425 = vld [vmem:[#allocation2 + $0x10] sm:$0xff]
          %v426 = vld [vmem:[#allocation2 + $0x18] sm:$0xff]
          %v427 = vld [vmem:[#allocation2 + $0x20] sm:$0xff]
          %v428 = vld [vmem:[#allocation2 + $0x28] sm:$0xff]
          %v429 = vld [vmem:[#allocation2 + $0x30] sm:$0xff]
          %v430 = vld [vmem:[#allocation2 + $0x38] sm:$0xff]
          %v431 = vld [vmem:[#allocation3] sm:$0xff]
          %v432 = vld [vmem:[#allocation3 + $0x8] sm:$0xff]
          %v433 = vld [vmem:[#allocation3 + $0x10] sm:$0xff]
          %v434 = vld [vmem:[#allocation3 + $0x18] sm:$0xff]
          %v435 = vld [vmem:[#allocation3 + $0x20] sm:$0xff]
          %v436 = vld [vmem:[#allocation3 + $0x28] sm:$0xff]
          %v437 = vld [vmem:[#allocation3 + $0x30] sm:$0xff]
          %v438 = vld [vmem:[#allocation3 + $0x38] sm:$0xff]
          %v439 = vmul.f32 %v423, 0.00390625
          %v440 = vmul.f32 %v424, 0.00390625
          %v441 = vmul.f32 %v425, 0.00390625
          %v442 = vmul.f32 %v426, 0.00390625
          %v443 = vmul.f32 %v427, 0.00390625
          %v444 = vmul.f32 %v428, 0.00390625
          %v445 = vmul.f32 %v429, 0.00390625
          %v446 = vmul.f32 %v430, 0.00390625
          %455 = vset.pattern.permute.xlu0 0
          %456 = vperm.xlu0 %455, %v439
          %v457 = vpop.permute.xlu0 %456
          %458 = vset.pattern.permute.xlu0 0
          %459 = vperm.xlu0 %458, %v440
          %v460 = vpop.permute.xlu0 %459
          %461 = vset.pattern.permute.xlu0 0
          %462 = vperm.xlu0 %461, %v441
          %v463 = vpop.permute.xlu0 %462
          %464 = vset.pattern.permute.xlu0 0
          %465 = vperm.xlu0 %464, %v442
          %v466 = vpop.permute.xlu0 %465
          %467 = vset.pattern.permute.xlu0 0
          %468 = vperm.xlu0 %467, %v443
          %v469 = vpop.permute.xlu0 %468
          %470 = vset.pattern.permute.xlu0 0
          %471 = vperm.xlu0 %470, %v444
          %v472 = vpop.permute.xlu0 %471
          %473 = vset.pattern.permute.xlu0 0
          %474 = vperm.xlu0 %473, %v445
          %v475 = vpop.permute.xlu0 %474
          %476 = vset.pattern.permute.xlu0 0
          %477 = vperm.xlu0 %476, %v446
          %v478 = vpop.permute.xlu0 %477
          %v479 = vlaneseq
          %v480 = vand.u32 %v479, 127
          %v481 = vlaneseq
          %v482 = vshrl.u32 %v481, 7
          %v483 = vsub.s32 %v480, %v482
          %v484 = vrot.slane %v457, %v483
          %v485 = vadd.s32 %v480, 4294967288
          %v486 = vlaneseq
          %v487 = vshrl.u32 %v486, 7
          %v488 = vsub.s32 %v485, %v487
          %v489 = vrot.slane %v460, %v488
          %vm490 = vcmask 130112
          %v491 = vsel %vm490, %v489, %v484
          %v492 = vadd.s32 %v480, 4294967280
          %v493 = vlaneseq
          %v494 = vshrl.u32 %v493, 7
          %v495 = vsub.s32 %v492, %v494
          %v496 = vrot.slane %v463, %v495
          %vm497 = vcmask 195712
          %v498 = vsel %vm497, %v496, %v491
          %v499 = vadd.s32 %v480, 4294967272
          %v500 = vlaneseq
          %v501 = vshrl.u32 %v500, 7
          %v502 = vsub.s32 %v499, %v501
          %v503 = vrot.slane %v466, %v502
          %vm504 = vcmask 261312
          %v505 = vsel %vm504, %v503, %v498
          %v506 = vadd.s32 %v480, 4294967264
          %v507 = vlaneseq
          %v508 = vshrl.u32 %v507, 7
          %v509 = vsub.s32 %v506, %v508
          %v510 = vrot.slane %v469, %v509
          %vm511 = vcmask 326912
          %v512 = vsel %vm511, %v510, %v505
          %v513 = vadd.s32 %v480, 4294967256
          %v514 = vlaneseq
          %v515 = vshrl.u32 %v514, 7
          %v516 = vsub.s32 %v513, %v515
          %v517 = vrot.slane %v472, %v516
          %vm518 = vcmask 392512
          %v519 = vsel %vm518, %v517, %v512
          %v520 = vadd.s32 %v480, 4294967248
          %v521 = vlaneseq
          %v522 = vshrl.u32 %v521, 7
          %v523 = vsub.s32 %v520, %v522
          %v524 = vrot.slane %v475, %v523
          %vm525 = vcmask 458112
          %v526 = vsel %vm525, %v524, %v519
          %v527 = vadd.s32 %v480, 4294967240
          %v528 = vlaneseq
          %v529 = vshrl.u32 %v528, 7
          %v530 = vsub.s32 %v527, %v529
          %v531 = vrot.slane %v478, %v530
          %vm532 = vcmask 523712
          %v533 = vsel %vm532, %v531, %v526
          %543 = vset.pattern.permute.xlu0 0
          %544 = vperm.xlu0 %543, %v431
          %v545 = vpop.permute.xlu0 %544
          %546 = vset.pattern.permute.xlu0 0
          %547 = vperm.xlu0 %546, %v432
          %v548 = vpop.permute.xlu0 %547
          %549 = vset.pattern.permute.xlu0 0
          %550 = vperm.xlu0 %549, %v433
          %v551 = vpop.permute.xlu0 %550
          %552 = vset.pattern.permute.xlu0 0
          %553 = vperm.xlu0 %552, %v434
          %v554 = vpop.permute.xlu0 %553
          %555 = vset.pattern.permute.xlu0 0
          %556 = vperm.xlu0 %555, %v435
          %v557 = vpop.permute.xlu0 %556
          %558 = vset.pattern.permute.xlu0 0
          %559 = vperm.xlu0 %558, %v436
          %v560 = vpop.permute.xlu0 %559
          %561 = vset.pattern.permute.xlu0 0
          %562 = vperm.xlu0 %561, %v437
          %v563 = vpop.permute.xlu0 %562
          %564 = vset.pattern.permute.xlu0 0
          %565 = vperm.xlu0 %564, %v438
          %v566 = vpop.permute.xlu0 %565
          %v567 = vlaneseq
          %v568 = vshrl.u32 %v567, 7
          %v569 = vsub.s32 %v480, %v568
          %v570 = vrot.slane %v545, %v569
          %v571 = vlaneseq
          %v572 = vshrl.u32 %v571, 7
          %v573 = vsub.s32 %v485, %v572
          %v574 = vrot.slane %v548, %v573
          %v575 = vsel %vm490, %v574, %v570
          %v576 = vlaneseq
          %v577 = vshrl.u32 %v576, 7
          %v578 = vsub.s32 %v492, %v577
          %v579 = vrot.slane %v551, %v578
          %v580 = vsel %vm497, %v579, %v575
          %v581 = vlaneseq
          %v582 = vshrl.u32 %v581, 7
          %v583 = vsub.s32 %v499, %v582
          %v584 = vrot.slane %v554, %v583
          %v585 = vsel %vm504, %v584, %v580
          %v586 = vlaneseq
          %v587 = vshrl.u32 %v586, 7
          %v588 = vsub.s32 %v506, %v587
          %v589 = vrot.slane %v557, %v588
          %v590 = vsel %vm511, %v589, %v585
          %v591 = vlaneseq
          %v592 = vshrl.u32 %v591, 7
          %v593 = vsub.s32 %v513, %v592
          %v594 = vrot.slane %v560, %v593
          %v595 = vsel %vm518, %v594, %v590
          %v596 = vlaneseq
          %v597 = vshrl.u32 %v596, 7
          %v598 = vsub.s32 %v520, %v597
          %v599 = vrot.slane %v563, %v598
          %v600 = vsel %vm525, %v599, %v595
          %v601 = vlaneseq
          %v602 = vshrl.u32 %v601, 7
          %v603 = vsub.s32 %v527, %v602
          %v604 = vrot.slane %v566, %v603
          %v605 = vsel %vm532, %v604, %v600
          %vm607 = vcmask 1040384
          %v608 = vsel %vm607, %v533, %v605
          %v609 = vld [vmem:[%s1] sm:$0xff]
          %v610 = vld [vmem:[%s1 + $0x8] sm:$0xff]
          %v611 = vld [vmem:[%s1 + $0x10] sm:$0xff]
          %v612 = vld [vmem:[%s1 + $0x18] sm:$0xff]
          %v613 = vld [vmem:[%s1 + $0x20] sm:$0xff]
          %v614 = vld [vmem:[%s1 + $0x28] sm:$0xff]
          %v615 = vld [vmem:[%s1 + $0x30] sm:$0xff]
          %v616 = vld [vmem:[%s1 + $0x38] sm:$0xff]
          %vm617 = vcmask 523264
          %v619 = vsel %vm617, %v608, 0
          %621 = vmatprep.subr.mxu0 0.0
          %622 = vmatpush1.msra.mxu0 0.0
          %623 = vmatprep.subr.mxu0 0.0
          %624 = vmatpush1.msra.mxu0 0.0
          %625 = vmatprep.subr.mxu0 0.0
          %626 = vmatpush1.msra.mxu0 0.0
          %627 = vmatprep.subr.mxu0 0.0
          %628 = vmatpush1.msra.mxu0 0.0
          %629 = vmatprep.subr.mxu0 0.0
          %630 = vmatpush1.msra.mxu0 0.0
          %631 = vmatprep.subr.mxu0 0.0
          %632 = vmatpush1.msra.mxu0 0.0
          %633 = vmatprep.subr.mxu0 0.0
          %634 = vmatpush1.msra.mxu0 0.0
          %635 = vmatprep.subr.mxu0 0.0
          %636 = vmatpush1.msra.mxu0 0.0
          %637 = vmatprep.subr.mxu0 0.0
          %638 = vmatpush1.msra.mxu0 %v616
          %639 = vmatprep.subr.mxu0 0.0
          %640 = vmatpush1.msra.mxu0 %v615
          %641 = vmatprep.subr.mxu0 0.0
          %642 = vmatpush1.msra.mxu0 %v614
          %643 = vmatprep.subr.mxu0 0.0
          %644 = vmatpush1.msra.mxu0 %v613
          %645 = vmatprep.subr.mxu0 0.0
          %646 = vmatpush1.msra.mxu0 %v612
          %647 = vmatprep.subr.mxu0 0.0
          %648 = vmatpush1.msra.mxu0 %v611
          %649 = vmatprep.subr.mxu0 0.0
          %650 = vmatpush1.msra.mxu0 %v610
          %651 = vmatprep.subr.mxu0 0.0
          %652 = vmatpush1.msra.mxu0 %v609
          %653 = vmatprep.subr.mxu0 0.0
          %654 = vmatpush2.msra.mxu0 0.0
          %655 = vmatprep.subr.mxu0 0.0
          %656 = vmatpush2.msra.mxu0 0.0
          %657 = vmatprep.subr.mxu0 0.0
          %658 = vmatpush2.msra.mxu0 0.0
          %659 = vmatprep.subr.mxu0 0.0
          %660 = vmatpush2.msra.mxu0 0.0
          %661 = vmatprep.subr.mxu0 0.0
          %662 = vmatpush2.msra.mxu0 0.0
          %663 = vmatprep.subr.mxu0 0.0
          %664 = vmatpush2.msra.mxu0 0.0
          %665 = vmatprep.subr.mxu0 0.0
          %666 = vmatpush2.msra.mxu0 0.0
          %667 = vmatprep.subr.mxu0 0.0
          %668 = vmatpush2.msra.mxu0 0.0
          %669 = vmatprep.subr.mxu0 0.0
          %670 = vmatpush2.msra.mxu0 0.0
          %671 = vmatprep.subr.mxu0 0.0
          %672 = vmatpush2.msra.mxu0 0.0
          %673 = vmatprep.subr.mxu0 0.0
          %674 = vmatpush2.msra.mxu0 0.0
          %675 = vmatprep.subr.mxu0 0.0
          %676 = vmatpush2.msra.mxu0 0.0
          %677 = vmatprep.subr.mxu0 0.0
          %678 = vmatpush2.msra.mxu0 0.0
          %679 = vmatprep.subr.mxu0 0.0
          %680 = vmatpush2.msra.mxu0 0.0
          %681 = vmatprep.subr.mxu0 0.0
          %682 = vmatpush2.msra.mxu0 0.0
          %683 = vmatprep.subr.mxu0 0.0
          %684 = vmatpush2.msra.mxu0 0.0
          %685 = vmatprep.mubr.f32.mxu0 0.0
          %686 = vmatmul.mubr.f32.gmra.mxu0 %v619
          %v687 = vpop.f32.mrf.mxu0
          %v688 = vadd.f32 0.0, %v687
          %v689 = vpop.f32.mrf.mxu0
          %690 = vdwg.mxu0
          %v691 = vmax.f32 %v688, 0.0
          %v692 = vld [vmem:[%s2] sm:$0xf]
          %vm693 = vcmask 31744
          %v695 = vsel %vm693, %v691, 0
          %vm697 = vcmask 1043456
          %v699 = vsel %vm697, %v692, 0
          %701 = vmatprep.subr.mxu0 0.0
          %702 = vmatpush1.msra.mxu0 0.0
          %703 = vmatprep.subr.mxu0 0.0
          %704 = vmatpush1.msra.mxu0 0.0
          %705 = vmatprep.subr.mxu0 0.0
          %706 = vmatpush1.msra.mxu0 0.0
          %707 = vmatprep.subr.mxu0 0.0
          %708 = vmatpush1.msra.mxu0 0.0
          %709 = vmatprep.subr.mxu0 0.0
          %710 = vmatpush1.msra.mxu0 0.0
          %711 = vmatprep.subr.mxu0 0.0
          %712 = vmatpush1.msra.mxu0 0.0
          %713 = vmatprep.subr.mxu0 0.0
          %714 = vmatpush1.msra.mxu0 0.0
          %715 = vmatprep.subr.mxu0 0.0
          %716 = vmatpush1.msra.mxu0 0.0
          %717 = vmatprep.subr.mxu0 0.0
          %718 = vmatpush1.msra.mxu0 0.0
          %719 = vmatprep.subr.mxu0 0.0
          %720 = vmatpush1.msra.mxu0 0.0
          %721 = vmatprep.subr.mxu0 0.0
          %722 = vmatpush1.msra.mxu0 0.0
          %723 = vmatprep.subr.mxu0 0.0
          %724 = vmatpush1.msra.mxu0 0.0
          %725 = vmatprep.subr.mxu0 0.0
          %726 = vmatpush1.msra.mxu0 0.0
          %727 = vmatprep.subr.mxu0 0.0
          %728 = vmatpush1.msra.mxu0 0.0
          %729 = vmatprep.subr.mxu0 0.0
          %730 = vmatpush1.msra.mxu0 0.0
          %731 = vmatprep.subr.mxu0 0.0
          %732 = vmatpush1.msra.mxu0 %v699
          %733 = vmatprep.subr.mxu0 0.0
          %734 = vmatpush2.msra.mxu0 0.0
          %735 = vmatprep.subr.mxu0 0.0
          %736 = vmatpush2.msra.mxu0 0.0
          %737 = vmatprep.subr.mxu0 0.0
          %738 = vmatpush2.msra.mxu0 0.0
          %739 = vmatprep.subr.mxu0 0.0
          %740 = vmatpush2.msra.mxu0 0.0
          %741 = vmatprep.subr.mxu0 0.0
          %742 = vmatpush2.msra.mxu0 0.0
          %743 = vmatprep.subr.mxu0 0.0
          %744 = vmatpush2.msra.mxu0 0.0
          %745 = vmatprep.subr.mxu0 0.0
          %746 = vmatpush2.msra.mxu0 0.0
          %747 = vmatprep.subr.mxu0 0.0
          %748 = vmatpush2.msra.mxu0 0.0
          %749 = vmatprep.subr.mxu0 0.0
          %750 = vmatpush2.msra.mxu0 0.0
          %751 = vmatprep.subr.mxu0 0.0
          %752 = vmatpush2.msra.mxu0 0.0
          %753 = vmatprep.subr.mxu0 0.0
          %754 = vmatpush2.msra.mxu0 0.0
          %755 = vmatprep.subr.mxu0 0.0
          %756 = vmatpush2.msra.mxu0 0.0
          %757 = vmatprep.subr.mxu0 0.0
          %758 = vmatpush2.msra.mxu0 0.0
          %759 = vmatprep.subr.mxu0 0.0
          %760 = vmatpush2.msra.mxu0 0.0
          %761 = vmatprep.subr.mxu0 0.0
          %762 = vmatpush2.msra.mxu0 0.0
          %763 = vmatprep.subr.mxu0 0.0
          %764 = vmatpush2.msra.mxu0 0.0
          %765 = vmatprep.mubr.f32.mxu0 0.0
          %766 = vmatmul.mubr.f32.gmra.mxu0 %v695
          %v767 = vpop.f32.mrf.mxu0
          %v768 = vadd.f32 0.0, %v767
          %v769 = vpop.f32.mrf.mxu0
          %770 = vdwg.mxu0
          %v772 = vrot.slane %v768, 1
          %v774 = vadd.f32 %v768, %v772
          %v775 = vxor.u32 %v774, 2147483648
          %v776 = vmul.f32 %v775, 1.442695
          %v777 = vpow.pop %v776
          %v778 = vadd.f32 %v777, 1.0
          %v779 = vrcp.pop %v778
          %v780 = vmul.f32 1.0, %v779
          %vm781 = vcmask 516096
          %782 = vst.msk [vmem:[%s203] sm:$0x1] %vm781, %v780
        $region44: #{tpu_custom_call.1} parent=31 // pred_fallthru
          _
        %s783 = sand.u32 %s110, 1
        %s784 = scalar_lea.sflag [#allocation6], %s783
        %s785 = sand.u32 %s110, 1
        %s786 = scalar_lea.vmem [#allocation7], %s785
        // Predicated region
        $region45: #{tpu_custom_call.1} parent=31 // pred_check
          %p787 = pneg %p120
        $region46: #{tpu_custom_call.1} parent=31 // pred_check_branch
          %789 = sbr.rel (%p787) target = $region48
        $region47: #{tpu_custom_call.1} parent=31 // pred_region
          %s791 = ssub.s32 16, 16
          %792 = vsyncadd %s784, %s791
          %s793 = smul.addr %s24, 16
          %s794 = scalar_lea.hbm %s3, %s793
          %s796 = sshll.u32 %s786, 4
          %s797 = int_to_ptr.vmem [resolvable:$true] %s796
          %799 = dma.vmem_to_hbm [thread:$0]  %s797, 16, %s794, %s784
        $region48: #{tpu_custom_call.1} parent=31 // pred_fallthru
          _
      $region32: #{tpu_custom_call.1} parent=5 // pred_fallthru
        _
      %p800 = scmp.le.s32.totalorder 2, %s15
      // Predicated region
      $region49: #{tpu_custom_call.1} parent=5 // pred_check
        %p801 = pneg %p800
      $region50: #{tpu_custom_call.1} parent=5 // pred_check_branch
        %803 = sbr.rel (%p801) target = $region52
      $region51: #{tpu_custom_call.1} parent=5 // pred_region
        %s804 = ssub.s32 %s15, 2
        // Predicated region
        $region53: #{tpu_custom_call.1} parent=51 // pred_check
          %p805 = pneg %p126
        $region54: #{tpu_custom_call.1} parent=51 // pred_check_branch
          %807 = sbr.rel (%p805) target = $region56
        $region55: #{tpu_custom_call.1} parent=51 // pred_region
          %s808 = sand.u32 %s111, 1
          %s809 = scalar_lea.sflag [#allocation6], %s808
          %s810 = sand.u32 %s111, 1
          %s811 = scalar_lea.vmem [#allocation7], %s810
          %812 = dma.done %s809, 16
        $region56: #{tpu_custom_call.1} parent=51 // pred_fallthru
          _
      $region52: #{tpu_custom_call.1} parent=5 // pred_fallthru
        _
    $region6: #{tpu_custom_call.1} parent=1 // loop_footer
      %s19 = sadd.s32 1, %s15
    $region7: #{tpu_custom_call.1} parent=1 // loop_footer_branch
      %14 = sbr.rel target = $region3
    $region8: #{tpu_custom_call.1} parent=1 // loop_exit
      _
    %813 = vsyncpa [#allocation5], 1
    %s814 = scalar_lea.sflag [#allocation5], 1
    %815 = vsyncpa %s814, 1
    %816 = vsyncpa [#allocation6], 1
    %s817 = scalar_lea.sflag [#allocation6], 1
    %818 = vsyncpa %s817, 1

</llo_original>
